<compile_context>
chip_gen: v7x
topology: tpu7x:2x2x1
jax: 0.10.0
libtpu: 0.0.40
codegen_flags: <defaults>
</compile_context>

<pallas_src>
import functools

import jax
import jax.numpy as jnp
from jax import lax
from jax.experimental import pallas as pl
from jax.experimental.pallas import tpu as pltpu


def _round_up(x, m):
    return ((x + m - 1) // m) * m


# ---------------------------------------------------------------------------
# Kernel 1: fused K/V projection   kv[i] = x_tile @ [Wk^T | Wv^T]   (bf16 out)
# ---------------------------------------------------------------------------
def _kv_proj_kernel(x_ref, w_ref, kv_ref):
    kv_ref[...] = jnp.dot(
        x_ref[...], w_ref[...], preferred_element_type=jnp.float32
    ).astype(kv_ref.dtype)


# ---------------------------------------------------------------------------
# Kernel 2: flash attention with fused Q projection and VMEM-resident K / V.
# ---------------------------------------------------------------------------
def _flash_attn_kernel(x_ref, wq_ref, k_ref, v_ref, o_ref, *,
                       tkv, n_kv, seq_len, needs_mask):
    c_pad = o_ref.shape[-1]
    tq = x_ref.shape[0]
    mxu_dtype = k_ref.dtype  # bf16

    # q projection (1/sqrt(C) folded into Wq); feed the MXU bf16, accumulate f32.
    q = jnp.dot(x_ref[...], wq_ref[...],
                preferred_element_type=jnp.float32).astype(mxu_dtype)

    def step(k_tile, v_tile, m, l, acc, col_start=None):
        # scores: contract the channel dim of q and k directly (sublane-dim
        # slicing of the resident K is cheap; a pre-transposed K would force
        # 128-unaligned lane-dim dynamic slices, so we keep this layout).
        s = lax.dot_general(
            q, k_tile,
            dimension_numbers=(((1,), (1,)), ((), ())),
            preferred_element_type=jnp.float32)          # [tq, tkv] f32
        if col_start is not None:                        # only the last kv tile
            col = col_start + lax.broadcasted_iota(jnp.int32, s.shape, 1)
            s = jnp.where(col < seq_len, s, -1e30)       # exp underflows to 0
        m_new = jnp.maximum(m, jnp.max(s, axis=-1, keepdims=True))  # lane-rep
        alpha = jnp.exp(m - m_new)                       # [tq, c_pad] lane-rep
        p = jnp.exp(s - m_new[:, :1])                    # [tq, tkv] f32
        l = alpha * l + jnp.sum(p, axis=-1, keepdims=True)
        acc = alpha * acc + jnp.dot(p.astype(mxu_dtype), v_tile,
                                    preferred_element_type=jnp.float32)
        return m_new, l, acc

    m0 = jnp.full((tq, c_pad), -jnp.inf, jnp.float32)
    l0 = jnp.zeros((tq, c_pad), jnp.float32)
    acc0 = jnp.zeros((tq, c_pad), jnp.float32)
    carry = (m0, l0, acc0)

    # Unmasked kv tiles (all but the last one when the seq was padded).
    n_full = n_kv - 1 if needs_mask else n_kv

    def body(ki, carry):
        m, l, acc = carry
        start = pl.multiple_of(ki * tkv, tkv)
        return step(k_ref[pl.ds(start, tkv), :], v_ref[pl.ds(start, tkv), :],
                    m, l, acc)

    if n_full > 0:
        carry = lax.fori_loop(0, n_full, body, carry, unroll=min(4, n_full))

    # Statically peeled, masked last kv tile (only one that contains padding).
    if needs_mask:
        start = (n_kv - 1) * tkv
        m, l, acc = carry
        carry = step(k_ref[start:start + tkv, :], v_ref[start:start + tkv, :],
                     m, l, acc, col_start=start)

    m, l, acc = carry
    # Exact reciprocal: off the critical path, keeps accuracy margin with bf16.
    o_ref[...] = (acc * pl.reciprocal(l, approx=False)).astype(o_ref.dtype)


# ---------------------------------------------------------------------------
# Wrapper
# ---------------------------------------------------------------------------
def selfattention_pallas(x, wq, wk, wv):
    S, C = x.shape
    out_dtype = x.dtype
    compute_dtype = jnp.bfloat16
    scale = 1.0 / (float(C) ** 0.5)

    # Lane-dense channel padding.
    c_pad = _round_up(C, 128)

    # Tile selection: big enough to amortize grid overhead, split into >=2
    # q blocks for mid-size S so both v7x TensorCores get work.
    s8 = _round_up(max(S, 1), 8)
    if s8 <= 128:
        tq = s8                                     # single tiny block
    elif S <= 2048:
        tq = _round_up(pl.cdiv(S, 2), 128)          # two q blocks
    else:
        tq = 512                                    # long sequences
    s_pad = _round_up(S, tq)
    tkv = tq
    n_kv = s_pad // tkv
    needs_mask = s_pad != S

    # Weights: pre-transpose to [in, out], fold the softmax scale into Wq,
    # cast to bf16, zero-pad the channel dims.
    def prep_w(w, s=1.0):
        wt = (w * s).T.astype(compute_dtype)        # [C_in, C_out]
        return jnp.pad(wt, ((0, c_pad - C), (0, c_pad - C)))

    w_q = prep_w(wq, scale)                                       # [c_pad, c_pad]
    w_kv = jnp.concatenate([prep_w(wk), prep_w(wv)], axis=1)      # [c_pad, 2c_pad]
    x_bf = jnp.pad(x, ((0, s_pad - S), (0, c_pad - C))).astype(compute_dtype)

    vmem_limit = 48 * 1024 * 1024  # safe on v5e/v6e (128 MiB) and v7x (64 MiB)

    # --- Kernel 1: fused K/V projection (bf16 MXU, f32 accumulation). ---
    kv = pl.pallas_call(
        _kv_proj_kernel,
        out_shape=jax.ShapeDtypeStruct((s_pad, 2 * c_pad), compute_dtype),
        grid_spec=pltpu.PrefetchScalarGridSpec(
            num_scalar_prefetch=0,
            grid=(s_pad // tq,),
            in_specs=[
                pl.BlockSpec((tq, c_pad), lambda i: (i, 0)),
                pl.BlockSpec((c_pad, 2 * c_pad), lambda i: (0, 0)),  # resident
            ],
            out_specs=pl.BlockSpec((tq, 2 * c_pad), lambda i: (i, 0)),
        ),
        compiler_params=pltpu.CompilerParams(
            dimension_semantics=("parallel",),
            vmem_limit_bytes=vmem_limit,
        ),
    )(x_bf, w_kv)

    # --- Kernel 2: flash attention (fused q proj, resident K/V). ---
    kernel = functools.partial(_flash_attn_kernel, tkv=tkv, n_kv=n_kv,
                               seq_len=S, needs_mask=needs_mask)
    out_p = pl.pallas_call(
        kernel,
        out_shape=jax.ShapeDtypeStruct((s_pad, c_pad), out_dtype),
        grid_spec=pltpu.PrefetchScalarGridSpec(
            num_scalar_prefetch=0,
            grid=(s_pad // tq,),
            in_specs=[
                pl.BlockSpec((tq, c_pad), lambda qi: (qi, 0)),     # x q-tile
                pl.BlockSpec((c_pad, c_pad), lambda qi: (0, 0)),   # Wq resident
                pl.BlockSpec((s_pad, c_pad), lambda qi: (0, 0)),   # K resident
                pl.BlockSpec((s_pad, c_pad), lambda qi: (0, 1)),   # V resident
            ],
            out_specs=pl.BlockSpec((tq, c_pad), lambda qi: (qi, 0)),
        ),
        compiler_params=pltpu.CompilerParams(
            dimension_semantics=("parallel",),
            vmem_limit_bytes=vmem_limit,
        ),
    )(x_bf, w_q, kv, kv)

    return out_p[:S, :C]


def selfattention_ref(x, wq, wk, wv):
    C = x.shape[1]
    q = x @ wq.T
    k = x @ wk.T
    v = x @ wv.T
    scores = (q @ k.T) / (C ** 0.5)
    attn = jax.nn.softmax(scores, axis=-1)
    return attn @ v


if __name__ == "__main__":
    key = jax.random.PRNGKey(0)
    kx, kq, kk, kv_, kx2, kx3 = jax.random.split(key, 6)

    C = 32
    bound = 1.0 / (C ** 0.5)
    wq = jax.random.uniform(kq, (C, C), minval=-bound, maxval=bound, dtype=jnp.float32)
    wk = jax.random.uniform(kk, (C, C), minval=-bound, maxval=bound, dtype=jnp.float32)
    wv = jax.random.uniform(kv_, (C, C), minval=-bound, maxval=bound, dtype=jnp.float32)

    # bf16 matmul path -> compare against the f32 reference with bf16-level tolerance.
    ATOL = RTOL = 2e-2

    # Test 1: small exact-tile case (S=8).
    S = 8
    x = jax.random.normal(kx, (S, C), dtype=jnp.float32)
    out = jax.block_until_ready(selfattention_pallas(x, wq, wk, wv))
    ref = selfattention_ref(x, wq, wk, wv)
    assert out.shape == (S, C)
    assert jnp.allclose(out, ref, atol=ATOL, rtol=RTOL), "mismatch vs reference (S=8)"

    # Test 2: non-tile-aligned S (padding / masked last kv tile path).
    S2 = 12
    x2 = jax.random.normal(kx2, (S2, C), dtype=jnp.float32)
    out2 = jax.block_until_ready(selfattention_pallas(x2, wq, wk, wv))
    ref2 = selfattention_ref(x2, wq, wk, wv)
    assert out2.shape == (S2, C)
    assert jnp.allclose(out2, ref2, atol=ATOL, rtol=RTOL), "mismatch vs reference (S=12)"

    # Test 3: multiple q blocks + kv loop + masked last tile (S=200 -> tq=128).
    S3 = 200
    x3 = jax.random.normal(kx3, (S3, C), dtype=jnp.float32)
    out3 = jax.block_until_ready(selfattention_pallas(x3, wq, wk, wv))
    ref3 = selfattention_ref(x3, wq, wk, wv)
    assert out3.shape == (S3, C)
    assert jnp.allclose(out3, ref3, atol=ATOL, rtol=RTOL), "mismatch vs reference (S=200)"

    print("KERNEL_OK")
</pallas_src>

<mosaic_0001>
module attributes {stable_mosaic.version = 11 : i64} {
  func.func @_kv_proj_kernel(%arg0: i32, %arg1: memref<8x128xbf16, #tpu.memory_space<vmem>>, %arg2: memref<128x256xbf16, #tpu.memory_space<vmem>>, %arg3: memref<8x256xbf16, #tpu.memory_space<vmem>>) attributes {dimension_semantics = [#tpu.dimension_semantics<parallel>], iteration_bounds = array<i64: 1>, scalar_prefetch = 0 : i64, scratch_operands = 0 : i64, tpu.core_type = #tpu.core_type<tc>, window_params = [{transform_indices = @transform_0, window_bounds = array<i64: 8, 128>}, {pipeline_mode = #tpu.pipeline_mode<synchronous>, transform_indices = @transform_1, window_bounds = array<i64: 128, 256>}, {transform_indices = @transform_2, window_bounds = array<i64: 8, 256>}]} {
    %c0 = arith.constant 0 : index
    %c0_0 = arith.constant 0 : index
    %0 = vector.load %arg1[%c0, %c0_0] : memref<8x128xbf16, #tpu.memory_space<vmem>>, vector<8x128xbf16>
    %c0_1 = arith.constant 0 : index
    %c0_2 = arith.constant 0 : index
    %1 = vector.load %arg2[%c0_1, %c0_2] : memref<128x256xbf16, #tpu.memory_space<vmem>>, vector<128x256xbf16>
    %cst = arith.constant dense<0.000000e+00> : vector<8x256xf32>
    %2 = tpu.matmul %0, %1, %cst {dimension_numbers = #tpu.dot_dimension_numbers<[1], [0], [0], [1], [0, 0, 1, 1], [], []>} : vector<8x128xbf16>, vector<128x256xbf16>, vector<8x256xf32> -> vector<8x256xf32>
    %3 = arith.truncf %2 : vector<8x256xf32> to vector<8x256xbf16>
    %c0_3 = arith.constant 0 : index
    %c0_4 = arith.constant 0 : index
    %4 = vector.load %arg3[%c0_3, %c0_4] : memref<8x256xbf16, #tpu.memory_space<vmem>>, vector<8x256xbf16>
    tpu.vector_store %arg3[%c0_3, %c0_4], %3 {strides = array<i32>} : memref<8x256xbf16, #tpu.memory_space<vmem>>, vector<8x256xbf16>,
    return
  }
  func.func @transform_0(%arg0: i32) -> (i32, i32) {
    %c0_i32 = arith.constant 0 : i32
    %c0_i32_0 = arith.constant 0 : i32
    return %arg0, %c0_i32 : i32, i32
  }
  func.func @transform_1(%arg0: i32) -> (i32, i32) {
    %c0_i32 = arith.constant 0 : i32
    %c0_i32_0 = arith.constant 0 : i32
    %c0_i32_1 = arith.constant 0 : i32
    return %c0_i32, %c0_i32_0 : i32, i32
  }
  func.func @transform_2(%arg0: i32) -> (i32, i32) {
    %c0_i32 = arith.constant 0 : i32
    %c0_i32_0 = arith.constant 0 : i32
    return %arg0, %c0_i32 : i32, i32
  }
}

</mosaic_0001>

<llo_original>
// kernel: tpu_custom_call.1
$region0: #{tpu_custom_call.1}
  #allocation0 [shape = 'u32[]', space=smem, size = 0x4, offset = 0x4, fixed_abs, tag = 'smem constant byte address 0x4 - core index']
  #allocation1 [shape = 'u32[144,128]{1,0:T(1,128)}', space=vmem, size = 0x12000, scoped, tag = 'internal scratch']
  %s0 = inlined_call_operand.hbm [shape: bf16[8,128], index: 0, kind: input, shape index: {}]
  %s1 = inlined_call_operand.hbm [shape: bf16[128,256], index: 1, kind: input, shape index: {}]
  %s2 = inlined_call_operand.hbm [shape: bf16[8,256], index: 2, kind: output, shape index: {}]
  %s3 = sld [smem:[#allocation0]]
  $region26: #{tpu_custom_call.1} parent=0
    _
  %s5 = ssub.s32 1, %s3
  %s6 = scalar_select 0, %s5, %s3
  $region1: #{tpu_custom_call.1} parent=0
    #allocation2 [shape = 'u8[2048]{0}', space=vmem, size = 0x800, scoped, tag = 'input window, operand 0, single buffered']
    #allocation3 [shape = 's32[1]{0}', space=sflag, size = 0x4, scoped, tag = 'scoped memory for tpu_custom_call.1']
    #allocation4 [shape = 's32[1]{0}', space=sflag, size = 0x4, scoped, tag = 'scoped memory for tpu_custom_call.1']
    #allocation5 [shape = 'u8[65536]{0}', space=vmem, size = 0x10000, scoped, tag = 'input window, operand 1, single buffered']
    #allocation6 [shape = 's32[1]{0}', space=sflag, size = 0x4, scoped, tag = 'scoped memory for tpu_custom_call.1']
    #allocation7 [shape = 'u8[4096]{0}', space=vmem, size = 0x1000, scoped, tag = 'output window, operand 0, single buffered']
    %7 = vsyncpa [#allocation3], 0
    %8 = vsyncpa [#allocation6], 0
    %9 = vsyncpa [#allocation4], 0
    // Predicated region
    $region2: #{tpu_custom_call.1} parent=1 // pred_check
      _
    $region3: #{tpu_custom_call.1} parent=1 // pred_check_branch
      %11 = sbr.rel (0) target = $region5
    $region4: #{tpu_custom_call.1} parent=1 // pred_region
      %s13 = ssub.s32 64, 64
      %14 = vsyncadd [#allocation3], %s13
      %s16 = sshll.u32 [#allocation2], 4
      %s17 = int_to_ptr.vmem [resolvable:$true] %s16
      %19 = dma.hbm_to_vmem [thread:$0]  %s0, 64, %s17, [#allocation3]
    $region5: #{tpu_custom_call.1} parent=1 // pred_fallthru
      _
    // Predicated region
    $region6: #{tpu_custom_call.1} parent=1 // pred_check
      _
    $region7: #{tpu_custom_call.1} parent=1 // pred_check_branch
      %21 = sbr.rel (0) target = $region9
    $region8: #{tpu_custom_call.1} parent=1 // pred_region
      %s23 = ssub.s32 2048, 2048
      %24 = vsyncadd [#allocation6], %s23
      %s25 = sshll.u32 [#allocation5], 4
      %s26 = int_to_ptr.vmem [resolvable:$true] %s25
      %31 = dma.hbm_to_vmem [thread:$0]  %s1, 2048, %s26, [#allocation6], 128, 128, 8
    $region9: #{tpu_custom_call.1} parent=1 // pred_fallthru
      _
    // Predicated region
    $region10: #{tpu_custom_call.1} parent=1 // pred_check
      _
    $region11: #{tpu_custom_call.1} parent=1 // pred_check_branch
      %33 = sbr.rel (0) target = $region13
    $region12: #{tpu_custom_call.1} parent=1 // pred_region
      %34 = dma.done [#allocation3], 64
    $region13: #{tpu_custom_call.1} parent=1 // pred_fallthru
      _
    // Predicated region
    $region14: #{tpu_custom_call.1} parent=1 // pred_check
      _
    $region15: #{tpu_custom_call.1} parent=1 // pred_check_branch
      %36 = sbr.rel (0) target = $region17
    $region16: #{tpu_custom_call.1} parent=1 // pred_region
      %37 = dma.done [#allocation6], 2048
    $region17: #{tpu_custom_call.1} parent=1 // pred_fallthru
      _
    %v39 = vld [vmem:[#allocation2] sm:$0xf]
    %v40 = vld [vmem:[#allocation5] sm:$0xff]
    %v41 = vld [vmem:[#allocation5 + $0x8] sm:$0xff]
    %v42 = vld [vmem:[#allocation5 + $0x10] sm:$0xff]
    %v43 = vld [vmem:[#allocation5 + $0x18] sm:$0xff]
    %v44 = vld [vmem:[#allocation5 + $0x20] sm:$0xff]
    %v45 = vld [vmem:[#allocation5 + $0x28] sm:$0xff]
    %v46 = vld [vmem:[#allocation5 + $0x30] sm:$0xff]
    %v47 = vld [vmem:[#allocation5 + $0x38] sm:$0xff]
    %v48 = vld [vmem:[#allocation5 + $0x40] sm:$0xff]
    %v49 = vld [vmem:[#allocation5 + $0x48] sm:$0xff]
    %v50 = vld [vmem:[#allocation5 + $0x50] sm:$0xff]
    %v51 = vld [vmem:[#allocation5 + $0x58] sm:$0xff]
    %v52 = vld [vmem:[#allocation5 + $0x60] sm:$0xff]
    %v53 = vld [vmem:[#allocation5 + $0x68] sm:$0xff]
    %v54 = vld [vmem:[#allocation5 + $0x70] sm:$0xff]
    %v55 = vld [vmem:[#allocation5 + $0x78] sm:$0xff]
    %v72 = vunpack.c.l.b16 %v40
    %v73 = vunpack.c.h.b16 %v40
    %v74 = vunpack.c.l.b16 %v41
    %v75 = vunpack.c.h.b16 %v41
    %v76 = vunpack.c.l.b16 %v42
    %v77 = vunpack.c.h.b16 %v42
    %v78 = vunpack.c.l.b16 %v43
    %v79 = vunpack.c.h.b16 %v43
    %v80 = vunpack.c.l.b16 %v44
    %v81 = vunpack.c.h.b16 %v44
    %v82 = vunpack.c.l.b16 %v45
    %v83 = vunpack.c.h.b16 %v45
    %v84 = vunpack.c.l.b16 %v46
    %v85 = vunpack.c.h.b16 %v46
    %v86 = vunpack.c.l.b16 %v47
    %v87 = vunpack.c.h.b16 %v47
    %v88 = vunpack.c.l.b16 %v48
    %v89 = vunpack.c.h.b16 %v48
    %v90 = vunpack.c.l.b16 %v49
    %v91 = vunpack.c.h.b16 %v49
    %v92 = vunpack.c.l.b16 %v50
    %v93 = vunpack.c.h.b16 %v50
    %v94 = vunpack.c.l.b16 %v51
    %v95 = vunpack.c.h.b16 %v51
    %v96 = vunpack.c.l.b16 %v52
    %v97 = vunpack.c.h.b16 %v52
    %v98 = vunpack.c.l.b16 %v53
    %v99 = vunpack.c.h.b16 %v53
    %v100 = vunpack.c.l.b16 %v54
    %v101 = vunpack.c.h.b16 %v54
    %v102 = vunpack.c.l.b16 %v55
    %v103 = vunpack.c.h.b16 %v55
    %v104 = vpack.c.b16 %v74, %v72
    %v105 = vpack.c.b16 %v75, %v73
    %v106 = vpack.c.b16 %v78, %v76
    %v107 = vpack.c.b16 %v79, %v77
    %v108 = vpack.c.b16 %v82, %v80
    %v109 = vpack.c.b16 %v83, %v81
    %v110 = vpack.c.b16 %v86, %v84
    %v111 = vpack.c.b16 %v87, %v85
    %v112 = vpack.c.b16 %v90, %v88
    %v113 = vpack.c.b16 %v91, %v89
    %v114 = vpack.c.b16 %v94, %v92
    %v115 = vpack.c.b16 %v95, %v93
    %v116 = vpack.c.b16 %v98, %v96
    %v117 = vpack.c.b16 %v99, %v97
    %v118 = vpack.c.b16 %v102, %v100
    %v119 = vpack.c.b16 %v103, %v101
    %136 = vmatprep.subr.bf16.mxu0 %v105
    %137 = vmatpush1.bf16.msra.mxu0 %v104
    %138 = vmatprep.subr.bf16.mxu0 %v107
    %139 = vmatpush1.bf16.msra.mxu0 %v106
    %140 = vmatprep.subr.bf16.mxu0 %v109
    %141 = vmatpush1.bf16.msra.mxu0 %v108
    %142 = vmatprep.subr.bf16.mxu0 %v111
    %143 = vmatpush1.bf16.msra.mxu0 %v110
    %144 = vmatprep.subr.bf16.mxu0 %v113
    %145 = vmatpush1.bf16.msra.mxu0 %v112
    %146 = vmatprep.subr.bf16.mxu0 %v115
    %147 = vmatpush1.bf16.msra.mxu0 %v114
    %148 = vmatprep.subr.bf16.mxu0 %v117
    %149 = vmatpush1.bf16.msra.mxu0 %v116
    %150 = vmatprep.subr.bf16.mxu0 %v119
    %151 = vmatpush1.bf16.msra.mxu0 %v118
    %152 = vmatprep.subr.bf16.mxu0 0
    %153 = vmatpush1.bf16.msra.mxu0 0
    %154 = vmatprep.subr.bf16.mxu0 0
    %155 = vmatpush1.bf16.msra.mxu0 0
    %156 = vmatprep.subr.bf16.mxu0 0
    %157 = vmatpush1.bf16.msra.mxu0 0
    %158 = vmatprep.subr.bf16.mxu0 0
    %159 = vmatpush1.bf16.msra.mxu0 0
    %160 = vmatprep.subr.bf16.mxu0 0
    %161 = vmatpush1.bf16.msra.mxu0 0
    %162 = vmatprep.subr.bf16.mxu0 0
    %163 = vmatpush1.bf16.msra.mxu0 0
    %164 = vmatprep.subr.bf16.mxu0 0
    %165 = vmatpush1.bf16.msra.mxu0 0
    %166 = vmatprep.subr.bf16.mxu0 0
    %167 = vmatpush1.bf16.msra.mxu0 0
    %168 = vmatprep.mubr.bf16.mxu0 0
    %169 = vmatmul.mubr.bf16.gmra.mrb[0].mxu0 %v39
    %v170 = vpop.f32.mrb[0].mxu0
    %v171 = vadd.f32 0.0, %v170
    %v172 = vpop.f32.mrb[0].mxu0
    %v173 = vadd.f32 0.0, %v172
    %v174 = vpop.f32.mrb[0].mxu0
    %v175 = vpop.f32.mrb[0].mxu0
    %176 = vdwg.mxu0
    %v177 = vpack.c.bf16 %v171, %v171
    %v178 = vpack.c.bf16 %v173, %v173
    %v181 = vunpack.c.l.b16 %v177
    %v182 = vunpack.c.l.b16 %v178
    %v183 = vpack.c.b16 %v182, %v181
    %185 = vst [vmem:[#allocation7] sm:$0xff] %v183
    // Predicated region
    $region18: #{tpu_custom_call.1} parent=1 // pred_check
      _
    $region19: #{tpu_custom_call.1} parent=1 // pred_check_branch
      %187 = sbr.rel (0) target = $region21
    $region20: #{tpu_custom_call.1} parent=1 // pred_region
      %s189 = ssub.s32 128, 128
      %190 = vsyncadd [#allocation4], %s189
      %s192 = sshll.u32 [#allocation7], 4
      %s193 = int_to_ptr.vmem [resolvable:$true] %s192
      %195 = dma.vmem_to_hbm [thread:$0]  %s193, 128, %s2, [#allocation4]
    $region21: #{tpu_custom_call.1} parent=1 // pred_fallthru
      _
    // Predicated region
    $region22: #{tpu_custom_call.1} parent=1 // pred_check
      _
    $region23: #{tpu_custom_call.1} parent=1 // pred_check_branch
      %197 = sbr.rel (0) target = $region25
    $region24: #{tpu_custom_call.1} parent=1 // pred_region
      %198 = dma.done [#allocation4], 128
    $region25: #{tpu_custom_call.1} parent=1 // pred_fallthru
      _
    %199 = vsyncpa [#allocation3], 1
    %200 = vsyncpa [#allocation6], 1
    %201 = vsyncpa [#allocation4], 1

</llo_original>
